<compile_context>
chip_gen: v5e
topology: v5e:2x2
jax: 0.10.0
libtpu: 0.0.40
codegen_flags: <defaults>
</compile_context>

<pallas_src>
import jax
import jax.numpy as jnp
from jax.experimental import pallas as pl
from jax.experimental.pallas import tpu as pltpu


def mlp_kernel(x_ref, w1_ref, b1_ref, w2_ref, b2_ref, w3_ref, b3_ref, o_ref):
    x = x_ref[...]                      # (bm, in_dim) tile, f32
    in_dim = x_ref.shape[1]

    # ---- Layer 1: K = in_dim.
    if in_dim <= 8:
        # Tiny K -> VPU broadcast-FMA, skip an almost-empty MXU pass.
        h = x[:, 0:1] * w1_ref[0:1, :]
        for k in range(1, in_dim):      # static, unrolled (in_dim is tiny)
            h = h + x[:, k:k + 1] * w1_ref[k:k + 1, :]
    else:
        h = jnp.dot(x, w1_ref[...], preferred_element_type=jnp.float32)
    h = jnp.maximum(h + b1_ref[...], 0.0)

    # ---- Layer 2: width x width on the MXU. bf16 operands, f32 accumulation.
    # (Default-precision f32 dots lower to a bf16 MXU pass anyway; explicit
    #  bf16 halves vld / spill traffic for the (bm, width) intermediate.)
    # TODO(synk): pass precision=jax.lax.Precision.HIGHEST here if bit-closer
    # parity with an f32 reference is ever required (~3x MXU cost).
    h = jnp.dot(h.astype(jnp.bfloat16), w2_ref[...],
                preferred_element_type=jnp.float32) + b2_ref[...]
    h = jnp.maximum(h, 0.0)

    # ---- Layer 3 (output padded to lane-dense width) + sigmoid (exp -> EUP).
    out = jnp.dot(h.astype(jnp.bfloat16), w3_ref[...],
                  preferred_element_type=jnp.float32) + b3_ref[...]
    o_ref[...] = jax.nn.sigmoid(out)


def _round_up(a, m):
    return ((a + m - 1) // m) * m


def mlp_forward(x, w1, b1, w2, b2, w3, b3, *, bm=2048):
    N, in_dim = x.shape
    width = w2.shape[0]
    out_dim = w3.shape[1]

    # Adaptive batch tile: never pad a small batch up to the full tile, keep it
    # a multiple of 8 sublanes, and split big single-tile batches into >=2 grid
    # steps so both TensorCores work on v7x.
    bm = min(bm, _round_up(max(N, 1), 8))
    if bm >= _round_up(N, 8) and N >= 512:
        bm = _round_up(pl.cdiv(N, 2), 256)

    # Lane-dense output: pad the final projection to a multiple of 128 lanes so
    # output stores are full-lane (unmasked). Padded columns are zero weights /
    # zero bias and get sliced off below.
    out_pad = max(128, _round_up(out_dim, 128))
    if out_pad != out_dim:
        w3 = jnp.pad(w3, ((0, 0), (0, out_pad - out_dim)))
        b3 = jnp.pad(b3, ((0, 0), (0, out_pad - out_dim)))

    # bf16 operands for the two MXU matmuls (biases stay f32).
    w2 = w2.astype(jnp.bfloat16)
    w3 = w3.astype(jnp.bfloat16)

    # Pad the batch to a multiple of the batch tile; slice afterwards.
    n_pad = _round_up(N, bm)
    if n_pad != N:
        x = jnp.pad(x, ((0, n_pad - N), (0, 0)))

    # Whole-array VMEM residency for weights/biases (no per-step DMA, no
    # double-buffering).
    vmem_spec = pl.BlockSpec(memory_space=pltpu.MemorySpace.VMEM)

    # Scoped-VMEM budget: double-buffered x/out tiles + f32/bf16 intermediates
    # + resident weights, with 2x margin. Capped at 48 MiB so it stays under
    # v7x's 64 MiB physical VMEM while lifting v5e's 16 MiB / v6e's 32 MiB
    # scoped defaults.
    est = (2 * bm * in_dim * 4          # x double buffer (f32)
           + 2 * bm * out_pad * 4       # out double buffer (f32)
           + 4 * bm * width * 4         # h intermediates (generous)
           + (2 << 20))                 # weights/biases + slack
    vmem_limit = int(min(48 << 20, max(32 << 20, 2 * est)))

    out = pl.pallas_call(
        mlp_kernel,
        out_shape=jax.ShapeDtypeStruct((n_pad, out_pad), jnp.float32),
        grid_spec=pltpu.PrefetchScalarGridSpec(
            num_scalar_prefetch=0,
            grid=(n_pad // bm,),
            in_specs=[
                pl.BlockSpec((bm, in_dim), lambda i: (i, 0)),  # x tile over batch
                vmem_spec,  # w1 (f32, VPU path)
                vmem_spec,  # b1
                vmem_spec,  # w2 (bf16)
                vmem_spec,  # b2
                vmem_spec,  # w3 (bf16, lane-padded)
                vmem_spec,  # b3 (lane-padded)
            ],
            out_specs=pl.BlockSpec((bm, out_pad), lambda i: (i, 0)),
        ),
        compiler_params=pltpu.CompilerParams(
            dimension_semantics=("parallel",),
            vmem_limit_bytes=vmem_limit,
        ),
    )(x, w1, b1, w2, b2, w3, b3)

    # Padded rows/columns hold garbage / sigmoid(0)=0.5; slice them off here.
    # TODO(synk): a fused downstream consumer could take the padded buffer
    # directly and fold this slice to avoid re-reading the padded writeback.
    return out[:N, :out_dim]


def init_params(key, input_dim=2, output_dim=3, width=256):
    # Deterministic init mimicking nn.Linear's U(-1/sqrt(fan_in), 1/sqrt(fan_in)).
    ks = jax.random.split(key, 6)

    def linear(kw, kb, fan_in, fan_out):
        bound = 1.0 / jnp.sqrt(jnp.float32(fan_in))
        w = jax.random.uniform(kw, (fan_in, fan_out), jnp.float32, -bound, bound)
        # bias stored as (1, fan_out): 2-D VMEM tile, broadcasts over rows.
        b = jax.random.uniform(kb, (1, fan_out), jnp.float32, -bound, bound)
        return w, b

    w1, b1 = linear(ks[0], ks[1], input_dim, width)
    w2, b2 = linear(ks[2], ks[3], width, width)
    w3, b3 = linear(ks[4], ks[5], width, output_dim)
    return w1, b1, w2, b2, w3, b3


def reference_forward(x, w1, b1, w2, b2, w3, b3):
    h = jnp.maximum(x @ w1 + b1, 0.0)
    h = jnp.maximum(h @ w2 + b2, 0.0)
    return jax.nn.sigmoid(h @ w3 + b3)


if __name__ == "__main__":
    key = jax.random.PRNGKey(0)
    k_x, k_p = jax.random.split(key)

    batch, input_dim, output_dim, width = 16, 2, 3, 256
    x = jax.random.normal(k_x, (batch, input_dim), jnp.float32)
    params = init_params(k_p, input_dim=input_dim, output_dim=output_dim, width=width)

    out = mlp_forward(x, *params)
    out = jax.block_until_ready(out)

    ref = reference_forward(x, *params)
    assert out.shape == (batch, output_dim)
    # Tolerance covers bf16 MXU operands (same effective precision as the
    # default-precision f32 matmul path) vs the XLA reference; a sigmoid output
    # matching to 3e-3 still catches structural bugs.
    assert jnp.allclose(out, ref, atol=3e-3, rtol=3e-3), (
        f"mismatch vs JAX reference, max|diff|={jnp.max(jnp.abs(out - ref))}")

    print("KERNEL_OK")
</pallas_src>

<mosaic_0001>
module attributes {stable_mosaic.version = 11 : i64} {
  func.func @mlp_kernel(%arg0: i32, %arg1: memref<16x2xf32, #tpu.memory_space<vmem>>, %arg2: memref<2x256xf32, #tpu.memory_space<vmem>>, %arg3: memref<1x256xf32, #tpu.memory_space<vmem>>, %arg4: memref<256x256xbf16, #tpu.memory_space<vmem>>, %arg5: memref<1x256xf32, #tpu.memory_space<vmem>>, %arg6: memref<256x128xbf16, #tpu.memory_space<vmem>>, %arg7: memref<1x128xf32, #tpu.memory_space<vmem>>, %arg8: memref<16x128xf32, #tpu.memory_space<vmem>>) attributes {dimension_semantics = [#tpu.dimension_semantics<parallel>], iteration_bounds = array<i64: 1>, scalar_prefetch = 0 : i64, scratch_operands = 0 : i64, tpu.core_type = #tpu.core_type<tc>, window_params = [{transform_indices = @transform_0, window_bounds = array<i64: 16, 2>}, {pipeline_mode = #tpu.pipeline_mode<synchronous>, transform_indices = @transform_1, window_bounds = array<i64: 2, 256>}, {pipeline_mode = #tpu.pipeline_mode<synchronous>, transform_indices = @transform_2, window_bounds = array<i64: 1, 256>}, {pipeline_mode = #tpu.pipeline_mode<synchronous>, transform_indices = @transform_3, window_bounds = array<i64: 256, 256>}, {pipeline_mode = #tpu.pipeline_mode<synchronous>, transform_indices = @transform_4, window_bounds = array<i64: 1, 256>}, {pipeline_mode = #tpu.pipeline_mode<synchronous>, transform_indices = @transform_5, window_bounds = array<i64: 256, 128>}, {pipeline_mode = #tpu.pipeline_mode<synchronous>, transform_indices = @transform_6, window_bounds = array<i64: 1, 128>}, {transform_indices = @transform_7, window_bounds = array<i64: 16, 128>}]} {
    %c0 = arith.constant 0 : index
    %c0_0 = arith.constant 0 : index
    %0 = vector.load %arg1[%c0, %c0_0] : memref<16x2xf32, #tpu.memory_space<vmem>>, vector<16x2xf32>
    %1 = vector.extract_strided_slice %0 {offsets = [0, 0], sizes = [16, 1], strides = [1, 1]} : vector<16x2xf32> to vector<16x1xf32>
    %c0_1 = arith.constant 0 : index
    %c0_2 = arith.constant 0 : index
    %2 = vector.load %arg2[%c0_1, %c0_2] : memref<2x256xf32, #tpu.memory_space<vmem>>, vector<1x256xf32>
    %3 = vector.broadcast %1 : vector<16x1xf32> to vector<16x256xf32>
    %4 = vector.broadcast %2 : vector<1x256xf32> to vector<16x256xf32>
    %5 = arith.mulf %3, %4 : vector<16x256xf32>
    %6 = vector.extract_strided_slice %0 {offsets = [0, 1], sizes = [16, 1], strides = [1, 1]} : vector<16x2xf32> to vector<16x1xf32>
    %c1 = arith.constant 1 : index
    %c0_3 = arith.constant 0 : index
    %7 = vector.load %arg2[%c1, %c0_3] : memref<2x256xf32, #tpu.memory_space<vmem>>, vector<1x256xf32>
    %8 = vector.broadcast %6 : vector<16x1xf32> to vector<16x256xf32>
    %9 = vector.broadcast %7 : vector<1x256xf32> to vector<16x256xf32>
    %10 = arith.mulf %8, %9 : vector<16x256xf32>
    %11 = arith.addf %5, %10 : vector<16x256xf32>
    %c0_4 = arith.constant 0 : index
    %c0_5 = arith.constant 0 : index
    %12 = vector.load %arg3[%c0_4, %c0_5] : memref<1x256xf32, #tpu.memory_space<vmem>>, vector<1x256xf32>
    %13 = vector.broadcast %12 : vector<1x256xf32> to vector<16x256xf32>
    %14 = arith.addf %11, %13 : vector<16x256xf32>
    %cst = arith.constant 0.000000e+00 : f32
    %15 = vector.broadcast %cst : f32 to vector<16x256xf32>
    %16 = arith.maximumf %14, %15 : vector<16x256xf32>
    %17 = arith.truncf %16 : vector<16x256xf32> to vector<16x256xbf16>
    %c0_6 = arith.constant 0 : index
    %c0_7 = arith.constant 0 : index
    %18 = vector.load %arg4[%c0_6, %c0_7] : memref<256x256xbf16, #tpu.memory_space<vmem>>, vector<256x256xbf16>
    %cst_8 = arith.constant dense<0.000000e+00> : vector<16x256xf32>
    %19 = tpu.matmul %17, %18, %cst_8 {dimension_numbers = #tpu.dot_dimension_numbers<[1], [0], [0], [1], [0, 0, 1, 1], [], []>} : vector<16x256xbf16>, vector<256x256xbf16>, vector<16x256xf32> -> vector<16x256xf32>
    %c0_9 = arith.constant 0 : index
    %c0_10 = arith.constant 0 : index
    %20 = vector.load %arg5[%c0_9, %c0_10] : memref<1x256xf32, #tpu.memory_space<vmem>>, vector<1x256xf32>
    %21 = vector.broadcast %20 : vector<1x256xf32> to vector<16x256xf32>
    %22 = arith.addf %19, %21 : vector<16x256xf32>
    %cst_11 = arith.constant 0.000000e+00 : f32
    %23 = vector.broadcast %cst_11 : f32 to vector<16x256xf32>
    %24 = arith.maximumf %22, %23 : vector<16x256xf32>
    %25 = arith.truncf %24 : vector<16x256xf32> to vector<16x256xbf16>
    %c0_12 = arith.constant 0 : index
    %c0_13 = arith.constant 0 : index
    %26 = vector.load %arg6[%c0_12, %c0_13] : memref<256x128xbf16, #tpu.memory_space<vmem>>, vector<256x128xbf16>
    %cst_14 = arith.constant dense<0.000000e+00> : vector<16x128xf32>
    %27 = tpu.matmul %25, %26, %cst_14 {dimension_numbers = #tpu.dot_dimension_numbers<[1], [0], [0], [1], [0, 0, 1, 1], [], []>} : vector<16x256xbf16>, vector<256x128xbf16>, vector<16x128xf32> -> vector<16x128xf32>
    %c0_15 = arith.constant 0 : index
    %c0_16 = arith.constant 0 : index
    %28 = vector.load %arg7[%c0_15, %c0_16] : memref<1x128xf32, #tpu.memory_space<vmem>>, vector<1x128xf32>
    %29 = vector.broadcast %28 : vector<1x128xf32> to vector<16x128xf32>
    %30 = arith.addf %27, %29 : vector<16x128xf32>
    %31 = arith.negf %30 : vector<16x128xf32>
    %32 = math.exp %31 : vector<16x128xf32>
    %cst_17 = arith.constant 1.000000e+00 : f32
    %33 = vector.broadcast %cst_17 : f32 to vector<16x128xf32>
    %34 = arith.addf %33, %32 : vector<16x128xf32>
    %35 = arith.divf %33, %34 : vector<16x128xf32>
    %c0_18 = arith.constant 0 : index
    %c0_19 = arith.constant 0 : index
    %36 = vector.load %arg8[%c0_18, %c0_19] : memref<16x128xf32, #tpu.memory_space<vmem>>, vector<16x128xf32>
    tpu.vector_store %arg8[%c0_18, %c0_19], %35 {strides = array<i32>} : memref<16x128xf32, #tpu.memory_space<vmem>>, vector<16x128xf32>,
    return
  }
  func.func @transform_0(%arg0: i32) -> (i32, i32) {
    %c0_i32 = arith.constant 0 : i32
    %c0_i32_0 = arith.constant 0 : i32
    return %arg0, %c0_i32 : i32, i32
  }
  func.func @transform_1(%arg0: i32) -> (i32, i32) {
    %c0_i32 = arith.constant 0 : i32
    %c0_i32_0 = arith.constant 0 : i32
    %c0_i32_1 = arith.constant 0 : i32
    return %c0_i32, %c0_i32_0 : i32, i32
  }
  func.func @transform_2(%arg0: i32) -> (i32, i32) {
    %c0_i32 = arith.constant 0 : i32
    %c0_i32_0 = arith.constant 0 : i32
    %c0_i32_1 = arith.constant 0 : i32
    return %c0_i32, %c0_i32_0 : i32, i32
  }
  func.func @transform_3(%arg0: i32) -> (i32, i32) {
    %c0_i32 = arith.constant 0 : i32
    %c0_i32_0 = arith.constant 0 : i32
    %c0_i32_1 = arith.constant 0 : i32
    return %c0_i32, %c0_i32_0 : i32, i32
  }
  func.func @transform_4(%arg0: i32) -> (i32, i32) {
    %c0_i32 = arith.constant 0 : i32
    %c0_i32_0 = arith.constant 0 : i32
    %c0_i32_1 = arith.constant 0 : i32
    return %c0_i32, %c0_i32_0 : i32, i32
  }
  func.func @transform_5(%arg0: i32) -> (i32, i32) {
    %c0_i32 = arith.constant 0 : i32
    %c0_i32_0 = arith.constant 0 : i32
    %c0_i32_1 = arith.constant 0 : i32
    return %c0_i32, %c0_i32_0 : i32, i32
  }
  func.func @transform_6(%arg0: i32) -> (i32, i32) {
    %c0_i32 = arith.constant 0 : i32
    %c0_i32_0 = arith.constant 0 : i32
    %c0_i32_1 = arith.constant 0 : i32
    return %c0_i32, %c0_i32_0 : i32, i32
  }
  func.func @transform_7(%arg0: i32) -> (i32, i32) {
    %c0_i32 = arith.constant 0 : i32
    %c0_i32_0 = arith.constant 0 : i32
    return %arg0, %c0_i32 : i32, i32
  }
}

</mosaic_0001>

<llo_original>
// kernel: tpu_custom_call.1
$region0: #{tpu_custom_call.1}
  #allocation0 [shape = 'u32[]', space=smem, size = 0x4, offset = 0x4, fixed_abs, tag = 'smem constant byte address 0x4 - core index']
  #allocation1 [shape = 'u32[72,128]{1,0:T(1,128)}', space=vmem, size = 0x9000, scoped, tag = 'internal scratch']
  %s0 = inlined_call_operand.vmem [shape: f32[16,2], index: 0, kind: input, shape index: {}]
  %s1 = inlined_call_operand.vmem [shape: f32[2,256], index: 1, kind: input, shape index: {}]
  %s2 = inlined_call_operand.vmem [shape: f32[1,256], index: 2, kind: input, shape index: {}]
  %s3 = inlined_call_operand.hbm [shape: bf16[256,256], index: 3, kind: input, shape index: {}]
  %s4 = inlined_call_operand.vmem [shape: f32[1,256], index: 4, kind: input, shape index: {}]
  %s5 = inlined_call_operand.hbm [shape: bf16[256,128], index: 5, kind: input, shape index: {}]
  %s6 = inlined_call_operand.vmem [shape: f32[1,128], index: 6, kind: input, shape index: {}]
  %s7 = inlined_call_operand.hbm [shape: f32[16,128], index: 7, kind: output, shape index: {}]
  %s8 = sld [smem:[#allocation0]]
  $region46: #{tpu_custom_call.1} parent=0
    _
  %s10 = ssub.s32 1, %s8
  %s11 = scalar_select 0, %s10, %s8
  $region1: #{tpu_custom_call.1} parent=0
    #allocation2 [shape = 'u8[131072]{0}', space=vmem, size = 0x20000, scoped, tag = 'input window, operand 3, single buffered']
    #allocation3 [shape = 's32[1]{0}', space=sflag, size = 0x4, scoped, tag = 'scoped memory for tpu_custom_call.1']
    #allocation4 [shape = 's32[1]{0}', space=sflag, size = 0x4, scoped, tag = 'scoped memory for tpu_custom_call.1']
    #allocation5 [shape = 'u8[65536]{0}', space=vmem, size = 0x10000, scoped, tag = 'input window, operand 5, single buffered']
    #allocation6 [shape = 's32[1]{0}', space=sflag, size = 0x4, scoped, tag = 'scoped memory for tpu_custom_call.1']
    #allocation7 [shape = 'u8[8192]{0}', space=vmem, size = 0x2000, scoped, tag = 'output window, operand 0, single buffered']
    %12 = vsyncpa [#allocation3], 0
    %13 = vsyncpa [#allocation6], 0
    %14 = vsyncpa [#allocation4], 0
    // Predicated region
    $region2: #{tpu_custom_call.1} parent=1 // pred_check
      _
    $region3: #{tpu_custom_call.1} parent=1 // pred_check_branch
      %16 = sbr.rel (0) target = $region5
    $region4: #{tpu_custom_call.1} parent=1 // pred_region
      _
    $region5: #{tpu_custom_call.1} parent=1 // pred_fallthru
      _
    // Predicated region
    $region6: #{tpu_custom_call.1} parent=1 // pred_check
      _
    $region7: #{tpu_custom_call.1} parent=1 // pred_check_branch
      %18 = sbr.rel (0) target = $region9
    $region8: #{tpu_custom_call.1} parent=1 // pred_region
      _
    $region9: #{tpu_custom_call.1} parent=1 // pred_fallthru
      _
    // Predicated region
    $region10: #{tpu_custom_call.1} parent=1 // pred_check
      _
    $region11: #{tpu_custom_call.1} parent=1 // pred_check_branch
      %20 = sbr.rel (0) target = $region13
    $region12: #{tpu_custom_call.1} parent=1 // pred_region
      _
    $region13: #{tpu_custom_call.1} parent=1 // pred_fallthru
      _
    // Predicated region
    $region14: #{tpu_custom_call.1} parent=1 // pred_check
      _
    $region15: #{tpu_custom_call.1} parent=1 // pred_check_branch
      %22 = sbr.rel (0) target = $region17
    $region16: #{tpu_custom_call.1} parent=1 // pred_region
      %24 = vsyncadd [#allocation3], 0
      %s25 = sshll.u32 %s3, 4
      %s26 = int_to_ptr.hbm [resolvable:$true] %s25
      %s27 = sshll.u32 [#allocation2], 4
      %s28 = int_to_ptr.vmem [resolvable:$true] %s27
      %33 = dma.hbm_to_vmem [thread:$0]  %s26, 4096, %s28, [#allocation3], 128, 128, 8
    $region17: #{tpu_custom_call.1} parent=1 // pred_fallthru
      _
    // Predicated region
    $region18: #{tpu_custom_call.1} parent=1 // pred_check
      _
    $region19: #{tpu_custom_call.1} parent=1 // pred_check_branch
      %35 = sbr.rel (0) target = $region21
    $region20: #{tpu_custom_call.1} parent=1 // pred_region
      _
    $region21: #{tpu_custom_call.1} parent=1 // pred_fallthru
      _
    // Predicated region
    $region22: #{tpu_custom_call.1} parent=1 // pred_check
      _
    $region23: #{tpu_custom_call.1} parent=1 // pred_check_branch
      %37 = sbr.rel (0) target = $region25
    $region24: #{tpu_custom_call.1} parent=1 // pred_region
      %39 = vsyncadd [#allocation6], 0
      %s40 = sshll.u32 %s5, 4
      %s41 = int_to_ptr.hbm [resolvable:$true] %s40
      %s42 = sshll.u32 [#allocation5], 4
      %s43 = int_to_ptr.vmem [resolvable:$true] %s42
      %48 = dma.hbm_to_vmem [thread:$0]  %s41, 2048, %s43, [#allocation6], 64, 64, 4
    $region25: #{tpu_custom_call.1} parent=1 // pred_fallthru
      _
    // Predicated region
    $region26: #{tpu_custom_call.1} parent=1 // pred_check
      _
    $region27: #{tpu_custom_call.1} parent=1 // pred_check_branch
      %50 = sbr.rel (0) target = $region29
    $region28: #{tpu_custom_call.1} parent=1 // pred_region
      _
    $region29: #{tpu_custom_call.1} parent=1 // pred_fallthru
      _
    // Predicated region
    $region30: #{tpu_custom_call.1} parent=1 // pred_check
      _
    $region31: #{tpu_custom_call.1} parent=1 // pred_check_branch
      %52 = sbr.rel (0) target = $region33
    $region32: #{tpu_custom_call.1} parent=1 // pred_region
      %54 = dma.done [#allocation3], 4096
    $region33: #{tpu_custom_call.1} parent=1 // pred_fallthru
      _
    // Predicated region
    $region34: #{tpu_custom_call.1} parent=1 // pred_check
      _
    $region35: #{tpu_custom_call.1} parent=1 // pred_check_branch
      %56 = sbr.rel (0) target = $region37
    $region36: #{tpu_custom_call.1} parent=1 // pred_region
      %58 = dma.done [#allocation6], 2048
    $region37: #{tpu_custom_call.1} parent=1 // pred_fallthru
      _
    %v59 = vld [vmem:[%s0] sm:$0xff]
    %v60 = vld [vmem:[%s0 + $0x8] sm:$0xff]
    %v61 = vld [vmem:[%s1] ss:$2 sm:$0x3]
    %63 = vset.pattern.permute.xlu0 0
    %64 = vperm.xlu0 %63, %v59
    %v65 = vpop.permute.xlu0 %64
    %68 = vset.pattern.permute.xlu0 0
    %69 = vperm.xlu0 %68, %v60
    %v70 = vpop.permute.xlu0 %69
    %v73 = vperm.slane %v61, 0
    %v74 = vperm.slane %v61, 1
    %v77 = vmul.f32 %v65, %v73
    %v78 = vmul.f32 %v65, %v74
    %v79 = vmul.f32 %v70, %v73
    %v80 = vmul.f32 %v70, %v74
    %s81 = scalar_lea.vmem %s1, 1
    %v82 = vld [vmem:[%s81] ss:$2 sm:$0x3]
    %83 = vset.pattern.permute.xlu0 1
    %84 = vperm.xlu0 %83, %v59
    %v85 = vpop.permute.xlu0 %84
    %87 = vset.pattern.permute.xlu0 1
    %88 = vperm.xlu0 %87, %v60
    %v89 = vpop.permute.xlu0 %88
    %v92 = vperm.slane %v82, 0
    %v93 = vperm.slane %v82, 1
    %v96 = vmul.f32 %v85, %v92
    %v97 = vmul.f32 %v85, %v93
    %v98 = vmul.f32 %v89, %v92
    %v99 = vmul.f32 %v89, %v93
    %v100 = vadd.f32 %v77, %v96
    %v101 = vadd.f32 %v78, %v97
    %v102 = vadd.f32 %v79, %v98
    %v103 = vadd.f32 %v80, %v99
    %v104 = vld [vmem:[%s2] sm:$0x3]
    %v106 = vperm.slane %v104, 0
    %v107 = vperm.slane %v104, 1
    %v110 = vadd.f32 %v100, %v106
    %v111 = vadd.f32 %v101, %v107
    %v112 = vadd.f32 %v102, %v106
    %v113 = vadd.f32 %v103, %v107
    %v114 = vmax.f32 %v110, 0.0
    %v115 = vmax.f32 %v111, 0.0
    %v116 = vmax.f32 %v112, 0.0
    %v117 = vmax.f32 %v113, 0.0
    %v118 = vpack.c.bf16 %v116, %v114
    %v119 = vpack.c.bf16 %v117, %v115
    %v120 = vld [vmem:[#allocation2] sm:$0xff]
    %v121 = vld [vmem:[#allocation2 + $0x8] sm:$0xff]
    %v122 = vld [vmem:[#allocation2 + $0x10] sm:$0xff]
    %v123 = vld [vmem:[#allocation2 + $0x18] sm:$0xff]
    %v124 = vld [vmem:[#allocation2 + $0x20] sm:$0xff]
    %v125 = vld [vmem:[#allocation2 + $0x28] sm:$0xff]
    %v126 = vld [vmem:[#allocation2 + $0x30] sm:$0xff]
    %v127 = vld [vmem:[#allocation2 + $0x38] sm:$0xff]
    %v128 = vld [vmem:[#allocation2 + $0x40] sm:$0xff]
    %v129 = vld [vmem:[#allocation2 + $0x48] sm:$0xff]
    %v130 = vld [vmem:[#allocation2 + $0x50] sm:$0xff]
    %v131 = vld [vmem:[#allocation2 + $0x58] sm:$0xff]
    %v132 = vld [vmem:[#allocation2 + $0x60] sm:$0xff]
    %v133 = vld [vmem:[#allocation2 + $0x68] sm:$0xff]
    %v134 = vld [vmem:[#allocation2 + $0x70] sm:$0xff]
    %v135 = vld [vmem:[#allocation2 + $0x78] sm:$0xff]
    %v136 = vld [vmem:[#allocation2 + $0x80] sm:$0xff]
    %v137 = vld [vmem:[#allocation2 + $0x88] sm:$0xff]
    %v138 = vld [vmem:[#allocation2 + $0x90] sm:$0xff]
    %v139 = vld [vmem:[#allocation2 + $0x98] sm:$0xff]
    %v140 = vld [vmem:[#allocation2 + $0xa0] sm:$0xff]
    %v141 = vld [vmem:[#allocation2 + $0xa8] sm:$0xff]
    %v142 = vld [vmem:[#allocation2 + $0xb0] sm:$0xff]
    %v143 = vld [vmem:[#allocation2 + $0xb8] sm:$0xff]
    %v144 = vld [vmem:[#allocation2 + $0xc0] sm:$0xff]
    %v145 = vld [vmem:[#allocation2 + $0xc8] sm:$0xff]
    %v146 = vld [vmem:[#allocation2 + $0xd0] sm:$0xff]
    %v147 = vld [vmem:[#allocation2 + $0xd8] sm:$0xff]
    %v148 = vld [vmem:[#allocation2 + $0xe0] sm:$0xff]
    %v149 = vld [vmem:[#allocation2 + $0xe8] sm:$0xff]
    %v150 = vld [vmem:[#allocation2 + $0xf0] sm:$0xff]
    %v151 = vld [vmem:[#allocation2 + $0xf8] sm:$0xff]
    %v152 = vld [vmem:[%s4] sm:$0x3]
    %v154 = vperm.slane %v152, 0
    %v155 = vperm.slane %v152, 1
    %v190 = vunpack.c.l.b16 %v120
    %v191 = vunpack.c.h.b16 %v120
    %v192 = vunpack.c.l.b16 %v121
    %v193 = vunpack.c.h.b16 %v121
    %v194 = vunpack.c.l.b16 %v122
    %v195 = vunpack.c.h.b16 %v122
    %v196 = vunpack.c.l.b16 %v123
    %v197 = vunpack.c.h.b16 %v123
    %v198 = vunpack.c.l.b16 %v124
    %v199 = vunpack.c.h.b16 %v124
    %v200 = vunpack.c.l.b16 %v125
    %v201 = vunpack.c.h.b16 %v125
    %v202 = vunpack.c.l.b16 %v126
    %v203 = vunpack.c.h.b16 %v126
    %v204 = vunpack.c.l.b16 %v127
    %v205 = vunpack.c.h.b16 %v127
    %v206 = vunpack.c.l.b16 %v128
    %v207 = vunpack.c.h.b16 %v128
    %v208 = vunpack.c.l.b16 %v129
    %v209 = vunpack.c.h.b16 %v129
    %v210 = vunpack.c.l.b16 %v130
    %v211 = vunpack.c.h.b16 %v130
    %v212 = vunpack.c.l.b16 %v131
    %v213 = vunpack.c.h.b16 %v131
    %v214 = vunpack.c.l.b16 %v132
    %v215 = vunpack.c.h.b16 %v132
    %v216 = vunpack.c.l.b16 %v133
    %v217 = vunpack.c.h.b16 %v133
    %v218 = vunpack.c.l.b16 %v134
    %v219 = vunpack.c.h.b16 %v134
    %v220 = vunpack.c.l.b16 %v135
    %v221 = vunpack.c.h.b16 %v135
    %v222 = vunpack.c.l.b16 %v136
    %v223 = vunpack.c.h.b16 %v136
    %v224 = vunpack.c.l.b16 %v137
    %v225 = vunpack.c.h.b16 %v137
    %v226 = vunpack.c.l.b16 %v138
    %v227 = vunpack.c.h.b16 %v138
    %v228 = vunpack.c.l.b16 %v139
    %v229 = vunpack.c.h.b16 %v139
    %v230 = vunpack.c.l.b16 %v140
    %v231 = vunpack.c.h.b16 %v140
    %v232 = vunpack.c.l.b16 %v141
    %v233 = vunpack.c.h.b16 %v141
    %v234 = vunpack.c.l.b16 %v142
    %v235 = vunpack.c.h.b16 %v142
    %v236 = vunpack.c.l.b16 %v143
    %v237 = vunpack.c.h.b16 %v143
    %v238 = vunpack.c.l.b16 %v144
    %v239 = vunpack.c.h.b16 %v144
    %v240 = vunpack.c.l.b16 %v145
    %v241 = vunpack.c.h.b16 %v145
    %v242 = vunpack.c.l.b16 %v146
    %v243 = vunpack.c.h.b16 %v146
    %v244 = vunpack.c.l.b16 %v147
    %v245 = vunpack.c.h.b16 %v147
    %v246 = vunpack.c.l.b16 %v148
    %v247 = vunpack.c.h.b16 %v148
    %v248 = vunpack.c.l.b16 %v149
    %v249 = vunpack.c.h.b16 %v149
    %v250 = vunpack.c.l.b16 %v150
    %v251 = vunpack.c.h.b16 %v150
    %v252 = vunpack.c.l.b16 %v151
    %v253 = vunpack.c.h.b16 %v151
    %v254 = vpack.c.b16 %v192, %v190
    %v255 = vpack.c.b16 %v193, %v191
    %v256 = vpack.c.b16 %v196, %v194
    %v257 = vpack.c.b16 %v197, %v195
    %v258 = vpack.c.b16 %v200, %v198
    %v259 = vpack.c.b16 %v201, %v199
    %v260 = vpack.c.b16 %v204, %v202
    %v261 = vpack.c.b16 %v205, %v203
    %v262 = vpack.c.b16 %v208, %v206
    %v263 = vpack.c.b16 %v209, %v207
    %v264 = vpack.c.b16 %v212, %v210
    %v265 = vpack.c.b16 %v213, %v211
    %v266 = vpack.c.b16 %v216, %v214
    %v267 = vpack.c.b16 %v217, %v215
    %v268 = vpack.c.b16 %v220, %v218
    %v269 = vpack.c.b16 %v221, %v219
    %v270 = vpack.c.b16 %v224, %v222
    %v271 = vpack.c.b16 %v225, %v223
    %v272 = vpack.c.b16 %v228, %v226
    %v273 = vpack.c.b16 %v229, %v227
    %v274 = vpack.c.b16 %v232, %v230
    %v275 = vpack.c.b16 %v233, %v231
    %v276 = vpack.c.b16 %v236, %v234
    %v277 = vpack.c.b16 %v237, %v235
    %v278 = vpack.c.b16 %v240, %v238
    %v279 = vpack.c.b16 %v241, %v239
    %v280 = vpack.c.b16 %v244, %v242
    %v281 = vpack.c.b16 %v245, %v243
    %v282 = vpack.c.b16 %v248, %v246
    %v283 = vpack.c.b16 %v249, %v247
    %v284 = vpack.c.b16 %v252, %v250
    %v285 = vpack.c.b16 %v253, %v251
    %318 = vmatpush.bf16.msra.mxu0 %v268
    %319 = vmatpush.bf16.msra.mxu0 %v266
    %320 = vmatpush.bf16.msra.mxu0 %v264
    %321 = vmatpush.bf16.msra.mxu0 %v262
    %322 = vmatpush.bf16.msra.mxu0 %v260
    %323 = vmatpush.bf16.msra.mxu0 %v258
    %324 = vmatpush.bf16.msra.mxu0 %v256
    %325 = vmatpush.bf16.msra.mxu0 %v254
    %326 = vmatmul.bf16.gmra.mxu0 %v118
    %v327 = vpop.f32.mrf.mxu0
    %v328 = vadd.f32 %v154, %v327
    %v329 = vpop.f32.mrf.mxu0
    %v330 = vadd.f32 %v154, %v329
    %331 = vdwg.mxu0
    %332 = vmatpush.bf16.msra.mxu0 %v284
    %333 = vmatpush.bf16.msra.mxu0 %v282
    %334 = vmatpush.bf16.msra.mxu0 %v280
    %335 = vmatpush.bf16.msra.mxu0 %v278
    %336 = vmatpush.bf16.msra.mxu0 %v276
    %337 = vmatpush.bf16.msra.mxu0 %v274
    %338 = vmatpush.bf16.msra.mxu0 %v272
    %339 = vmatpush.bf16.msra.mxu0 %v270
    %340 = vmatmul.bf16.gmra.mxu0 %v119
    %v341 = vpop.f32.mrf.mxu0
    %v342 = vadd.f32 %v328, %v341
    %v343 = vpop.f32.mrf.mxu0
    %v344 = vadd.f32 %v330, %v343
    %345 = vdwg.mxu0
    %346 = vmatpush.bf16.msra.mxu0 %v269
    %347 = vmatpush.bf16.msra.mxu0 %v267
    %348 = vmatpush.bf16.msra.mxu0 %v265
    %349 = vmatpush.bf16.msra.mxu0 %v263
    %350 = vmatpush.bf16.msra.mxu0 %v261
    %351 = vmatpush.bf16.msra.mxu0 %v259
    %352 = vmatpush.bf16.msra.mxu0 %v257
    %353 = vmatpush.bf16.msra.mxu0 %v255
    %354 = vmatmul.bf16.gmra.mxu0 %v118
    %v355 = vpop.f32.mrf.mxu0
    %v356 = vadd.f32 %v155, %v355
    %v357 = vpop.f32.mrf.mxu0
    %v358 = vadd.f32 %v155, %v357
    %359 = vdwg.mxu0
    %360 = vmatpush.bf16.msra.mxu0 %v285
    %361 = vmatpush.bf16.msra.mxu0 %v283
    %362 = vmatpush.bf16.msra.mxu0 %v281
    %363 = vmatpush.bf16.msra.mxu0 %v279
    %364 = vmatpush.bf16.msra.mxu0 %v277
    %365 = vmatpush.bf16.msra.mxu0 %v275
    %366 = vmatpush.bf16.msra.mxu0 %v273
    %367 = vmatpush.bf16.msra.mxu0 %v271
    %368 = vmatmul.bf16.gmra.mxu0 %v119
    %v369 = vpop.f32.mrf.mxu0
    %v370 = vadd.f32 %v356, %v369
    %v371 = vpop.f32.mrf.mxu0
    %v372 = vadd.f32 %v358, %v371
    %373 = vdwg.mxu0
    %v374 = vmax.f32 %v342, 0.0
    %v375 = vmax.f32 %v370, 0.0
    %v376 = vmax.f32 %v344, 0.0
    %v377 = vmax.f32 %v372, 0.0
    %v378 = vpack.c.bf16 %v376, %v374
    %v379 = vpack.c.bf16 %v377, %v375
    %v380 = vld [vmem:[#allocation5] sm:$0xf]
    %v381 = vld [vmem:[#allocation5 + $0x4] sm:$0xf]
    %v382 = vld [vmem:[#allocation5 + $0x8] sm:$0xf]
    %v383 = vld [vmem:[#allocation5 + $0xc] sm:$0xf]
    %v384 = vld [vmem:[#allocation5 + $0x10] sm:$0xf]
    %v385 = vld [vmem:[#allocation5 + $0x14] sm:$0xf]
    %v386 = vld [vmem:[#allocation5 + $0x18] sm:$0xf]
    %v387 = vld [vmem:[#allocation5 + $0x1c] sm:$0xf]
    %v388 = vld [vmem:[#allocation5 + $0x20] sm:$0xf]
    %v389 = vld [vmem:[#allocation5 + $0x24] sm:$0xf]
    %v390 = vld [vmem:[#allocation5 + $0x28] sm:$0xf]
    %v391 = vld [vmem:[#allocation5 + $0x2c] sm:$0xf]
    %v392 = vld [vmem:[#allocation5 + $0x30] sm:$0xf]
    %v393 = vld [vmem:[#allocation5 + $0x34] sm:$0xf]
    %v394 = vld [vmem:[#allocation5 + $0x38] sm:$0xf]
    %v395 = vld [vmem:[#allocation5 + $0x3c] sm:$0xf]
    %v396 = vld [vmem:[#allocation5 + $0x40] sm:$0xf]
    %v397 = vld [vmem:[#allocation5 + $0x44] sm:$0xf]
    %v398 = vld [vmem:[#allocation5 + $0x48] sm:$0xf]
    %v399 = vld [vmem:[#allocation5 + $0x4c] sm:$0xf]
    %v400 = vld [vmem:[#allocation5 + $0x50] sm:$0xf]
    %v401 = vld [vmem:[#allocation5 + $0x54] sm:$0xf]
    %v402 = vld [vmem:[#allocation5 + $0x58] sm:$0xf]
    %v403 = vld [vmem:[#allocation5 + $0x5c] sm:$0xf]
    %v404 = vld [vmem:[#allocation5 + $0x60] sm:$0xf]
    %v405 = vld [vmem:[#allocation5 + $0x64] sm:$0xf]
    %v406 = vld [vmem:[#allocation5 + $0x68] sm:$0xf]
    %v407 = vld [vmem:[#allocation5 + $0x6c] sm:$0xf]
    %v408 = vld [vmem:[#allocation5 + $0x70] sm:$0xf]
    %v409 = vld [vmem:[#allocation5 + $0x74] sm:$0xf]
    %v410 = vld [vmem:[#allocation5 + $0x78] sm:$0xf]
    %v411 = vld [vmem:[#allocation5 + $0x7c] sm:$0xf]
    %v412 = vld [vmem:[%s6] sm:$0x1]
    %v414 = vperm.slane %v412, 0
    %v448 = vunpack.c.l.b16 %v380
    %v449 = vunpack.c.l.b16 %v381
    %v450 = vunpack.c.l.b16 %v382
    %v451 = vunpack.c.l.b16 %v383
    %v452 = vunpack.c.l.b16 %v384
    %v453 = vunpack.c.l.b16 %v385
    %v454 = vunpack.c.l.b16 %v386
    %v455 = vunpack.c.l.b16 %v387
    %v456 = vunpack.c.l.b16 %v388
    %v457 = vunpack.c.l.b16 %v389
    %v458 = vunpack.c.l.b16 %v390
    %v459 = vunpack.c.l.b16 %v391
    %v460 = vunpack.c.l.b16 %v392
    %v461 = vunpack.c.l.b16 %v393
    %v462 = vunpack.c.l.b16 %v394
    %v463 = vunpack.c.l.b16 %v395
    %v464 = vunpack.c.l.b16 %v396
    %v465 = vunpack.c.l.b16 %v397
    %v466 = vunpack.c.l.b16 %v398
    %v467 = vunpack.c.l.b16 %v399
    %v468 = vunpack.c.l.b16 %v400
    %v469 = vunpack.c.l.b16 %v401
    %v470 = vunpack.c.l.b16 %v402
    %v471 = vunpack.c.l.b16 %v403
    %v472 = vunpack.c.l.b16 %v404
    %v473 = vunpack.c.l.b16 %v405
    %v474 = vunpack.c.l.b16 %v406
    %v475 = vunpack.c.l.b16 %v407
    %v476 = vunpack.c.l.b16 %v408
    %v477 = vunpack.c.l.b16 %v409
    %v478 = vunpack.c.l.b16 %v410
    %v479 = vunpack.c.l.b16 %v411
    %v480 = vpack.c.b16 %v449, %v448
    %v481 = vpack.c.b16 %v451, %v450
    %v482 = vpack.c.b16 %v453, %v452
    %v483 = vpack.c.b16 %v455, %v454
    %v484 = vpack.c.b16 %v457, %v456
    %v485 = vpack.c.b16 %v459, %v458
    %v486 = vpack.c.b16 %v461, %v460
    %v487 = vpack.c.b16 %v463, %v462
    %v488 = vpack.c.b16 %v465, %v464
    %v489 = vpack.c.b16 %v467, %v466
    %v490 = vpack.c.b16 %v469, %v468
    %v491 = vpack.c.b16 %v471, %v470
    %v492 = vpack.c.b16 %v473, %v472
    %v493 = vpack.c.b16 %v475, %v474
    %v494 = vpack.c.b16 %v477, %v476
    %v495 = vpack.c.b16 %v479, %v478
    %512 = vmatpush.bf16.msra.mxu0 %v487
    %513 = vmatpush.bf16.msra.mxu0 %v486
    %514 = vmatpush.bf16.msra.mxu0 %v485
    %515 = vmatpush.bf16.msra.mxu0 %v484
    %516 = vmatpush.bf16.msra.mxu0 %v483
    %517 = vmatpush.bf16.msra.mxu0 %v482
    %518 = vmatpush.bf16.msra.mxu0 %v481
    %519 = vmatpush.bf16.msra.mxu0 %v480
    %520 = vmatmul.bf16.gmra.mxu0 %v378
    %v521 = vpop.f32.mrf.mxu0
    %v522 = vadd.f32 %v414, %v521
    %v523 = vpop.f32.mrf.mxu0
    %v524 = vadd.f32 %v414, %v523
    %525 = vdwg.mxu0
    %526 = vmatpush.bf16.msra.mxu0 %v495
    %527 = vmatpush.bf16.msra.mxu0 %v494
    %528 = vmatpush.bf16.msra.mxu0 %v493
    %529 = vmatpush.bf16.msra.mxu0 %v492
    %530 = vmatpush.bf16.msra.mxu0 %v491
    %531 = vmatpush.bf16.msra.mxu0 %v490
    %532 = vmatpush.bf16.msra.mxu0 %v489
    %533 = vmatpush.bf16.msra.mxu0 %v488
    %534 = vmatmul.bf16.gmra.mxu0 %v379
    %v535 = vpop.f32.mrf.mxu0
    %v536 = vadd.f32 %v522, %v535
    %v537 = vpop.f32.mrf.mxu0
    %v538 = vadd.f32 %v524, %v537
    %539 = vdwg.mxu0
    %v540 = vxor.u32 %v536, 2147483648
    %v541 = vxor.u32 %v538, 2147483648
    %v542 = vmul.f32 %v540, 1.442695
    %v543 = vpow.pop %v542
    %v544 = vmul.f32 %v541, 1.442695
    %v545 = vpow.pop %v544
    %v546 = vadd.f32 %v543, 1.0
    %v547 = vadd.f32 %v545, 1.0
    %v548 = vrcp.pop %v546
    %v549 = vmul.f32 %v546, %v548
    %v550 = vsub.f32 1.0, %v549
    %v551 = vmul.f32 %v548, %v550
    %v552 = vadd.f32 %v548, %v551
    %vm553 = vweird.f32 %v546
    %vm554 = vweird.f32 %v548
    %vm555 = vmor %vm553, %vm554
    %v556 = vsel %vm555, %v548, %v552
    %v557 = vand.u32 2147483647, %v546
    %vm558 = vcmp.eq.f32.partialorder %v557, 8.507059e+37
    %v559 = vand.u32 %v546, 2147483648
    %v560 = vor.u32 1.1754944e-38, %v559
    %v561 = vsel %vm558, %v560, %v556
    %v562 = vmul.f32 1.0, %v561
    %v563 = vrcp.pop %v547
    %v564 = vmul.f32 %v547, %v563
    %v565 = vsub.f32 1.0, %v564
    %v566 = vmul.f32 %v563, %v565
    %v567 = vadd.f32 %v563, %v566
    %vm568 = vweird.f32 %v547
    %vm569 = vweird.f32 %v563
    %vm570 = vmor %vm568, %vm569
    %v571 = vsel %vm570, %v563, %v567
    %v572 = vand.u32 2147483647, %v547
    %vm573 = vcmp.eq.f32.partialorder %v572, 8.507059e+37
    %v574 = vand.u32 %v547, 2147483648
    %v575 = vor.u32 1.1754944e-38, %v574
    %v576 = vsel %vm573, %v575, %v571
    %v577 = vmul.f32 1.0, %v576
    %578 = vst [vmem:[#allocation7] sm:$0xff] %v562
    %579 = vst [vmem:[#allocation7 + $0x8] sm:$0xff] %v577
    // Predicated region
    $region38: #{tpu_custom_call.1} parent=1 // pred_check
      _
    $region39: #{tpu_custom_call.1} parent=1 // pred_check_branch
      %581 = sbr.rel (0) target = $region41
    $region40: #{tpu_custom_call.1} parent=1 // pred_region
      %583 = vsyncadd [#allocation4], 0
      %s584 = sshll.u32 [#allocation7], 4
      %s585 = int_to_ptr.vmem [resolvable:$true] %s584
      %s586 = sshll.u32 %s7, 4
      %s587 = int_to_ptr.hbm [resolvable:$true] %s586
      %592 = dma.vmem_to_hbm [thread:$0]  %s585, 256, %s587, [#allocation4], 128, 128, 8
    $region41: #{tpu_custom_call.1} parent=1 // pred_fallthru
      _
    // Predicated region
    $region42: #{tpu_custom_call.1} parent=1 // pred_check
      _
    $region43: #{tpu_custom_call.1} parent=1 // pred_check_branch
      %594 = sbr.rel (0) target = $region45
    $region44: #{tpu_custom_call.1} parent=1 // pred_region
      %596 = dma.done [#allocation4], 256
    $region45: #{tpu_custom_call.1} parent=1 // pred_fallthru
      _
    %597 = vsyncpa [#allocation3], 1
    %598 = vsyncpa [#allocation6], 1
    %599 = vsyncpa [#allocation4], 1

</llo_original>
